<compile_context>
chip_gen: v5e
topology: v5e:2x2
jax: 0.10.0
libtpu: 0.0.40
codegen_flags: <defaults>
</compile_context>

<pallas_src>
import jax
import jax.numpy as jnp
from jax import lax
from jax.experimental import pallas as pl
from jax.experimental.pallas import tpu as pltpu


def _round_up(x, m):
    return ((x + m - 1) // m) * m


# ----------------------------- Pallas kernel ---------------------------------
def _convblock_kernel(x_ref, w_ref, b_ref, o_ref):
    # x_ref: [TM, K_pad]   bf16 im2col patch tile
    # w_ref: [K_pad, TN]   bf16 weight tile (resident across M)
    # b_ref: [1, TN]       f32 bias tile (resident across M)
    # o_ref: [TM, TN]      f32 output tile (lane-dense: TN multiple of 128)
    acc = jnp.dot(x_ref[...], w_ref[...], preferred_element_type=jnp.float32)
    acc = acc + b_ref[...]
    # LeakyReLU with PyTorch default negative_slope = 0.01 (single select + add)
    o_ref[...] = jnp.where(acc >= 0, acc, 0.01 * acc).astype(o_ref.dtype)


def _matmul_bias_lrelu(patches, w_t, bias, *, tm):
    """patches: [M_pad, K_pad] bf16, w_t: [K_pad, Cout_pad] bf16, bias: [1, Cout_pad] f32."""
    M_pad, K_pad = patches.shape
    _, Cout_pad = w_t.shape
    TN = 128
    grid = (M_pad // tm, Cout_pad // TN)
    return pl.pallas_call(
        _convblock_kernel,
        out_shape=jax.ShapeDtypeStruct((M_pad, Cout_pad), jnp.float32),
        grid_spec=pltpu.PrefetchScalarGridSpec(
            num_scalar_prefetch=0,
            grid=grid,
            in_specs=[
                pl.BlockSpec((tm, K_pad), lambda i, j: (i, 0)),
                pl.BlockSpec((K_pad, TN), lambda i, j: (0, j)),
                pl.BlockSpec((1, TN), lambda i, j: (0, j)),
            ],
            out_specs=pl.BlockSpec((tm, TN), lambda i, j: (i, j)),
        ),
        compiler_params=pltpu.CompilerParams(
            dimension_semantics=("parallel", "parallel"),
            vmem_limit_bytes=64 << 20,
        ),
    )(patches, w_t, bias)


# ------------------------------ JAX glue --------------------------------------
def _im2col_nchw(x, kh=3, kw=3, stride=2, pad=1):
    """x: [B, Cin, H, W] -> patches [B*Ho*Wo, Cin*kh*kw] (row-major over (cin, kh, kw))."""
    B, Cin, H, W = x.shape
    Ho = (H + 2 * pad - kh) // stride + 1
    Wo = (W + 2 * pad - kw) // stride + 1
    xp = jnp.pad(x, ((0, 0), (0, 0), (pad, pad), (pad, pad)))
    taps = []
    for ky in range(kh):
        for kx in range(kw):
            # strided slice of shape [B, Cin, Ho, Wo]
            taps.append(xp[:, :, ky:ky + stride * Ho:stride, kx:kx + stride * Wo:stride])
    # [kh*kw, B, Cin, Ho, Wo] -> [B, Ho, Wo, Cin, kh*kw]
    t = jnp.stack(taps, axis=0)
    t = jnp.transpose(t, (1, 3, 4, 2, 0))
    patches = t.reshape(B * Ho * Wo, Cin * kh * kw)
    return patches, Ho, Wo


def conv_block_forward(x, weight, bias):
    """x: [B, Cin, H, W] NCHW, weight: [Cout, Cin, 3, 3], bias: [Cout].
    Returns LeakyReLU(conv2d(x, stride=2, pad=1)) in NCHW, f32."""
    B, Cin, H, W = x.shape
    Cout = weight.shape[0]

    patches, Ho, Wo = _im2col_nchw(x)                       # [M, K], K = Cin*9
    M, K = patches.shape

    # --- pad to TPU-friendly shapes -------------------------------------------
    K_pad = _round_up(K, 128)                               # lane-dense contraction
    Cout_pad = _round_up(Cout, 128)                         # lane-dense output (unmasked vst)
    if M <= 512:
        TM = _round_up(max(M, 8), 8)                        # single M tile for small inputs
        M_pad = TM
    else:
        TM = 512                                            # ~85% HBM roofline tile size
        M_pad = _round_up(M, TM)

    patches_p = jnp.zeros((M_pad, K_pad), dtype=jnp.bfloat16)
    patches_p = patches_p.at[:M, :K].set(patches.astype(jnp.bfloat16))

    w_t = weight.reshape(Cout, Cin * 9).T                   # [K, Cout], matches (cin,kh,kw) order
    w_p = jnp.zeros((K_pad, Cout_pad), dtype=jnp.bfloat16)
    w_p = w_p.at[:K, :Cout].set(w_t.astype(jnp.bfloat16))

    b_p = jnp.zeros((1, Cout_pad), dtype=jnp.float32)
    b_p = b_p.at[0, :Cout].set(bias.astype(jnp.float32))

    # --- tiled Pallas matmul + bias + LeakyReLU -------------------------------
    out_flat = _matmul_bias_lrelu(patches_p, w_p, b_p, tm=TM)   # [M_pad, Cout_pad] f32

    out = out_flat[:M, :Cout].reshape(B, Ho, Wo, Cout)
    # TODO(synk): keep NHWC for downstream ops to avoid this extra HBM round-trip.
    return jnp.transpose(out, (0, 3, 1, 2))                  # NCHW


# ------------------------------- main -----------------------------------------
if __name__ == "__main__":
    key = jax.random.PRNGKey(0)
    k_x, k_w, k_b = jax.random.split(key, 3)

    B, Cin, H, W = 2, 4, 16, 16
    Cout = 8

    x = jax.random.normal(k_x, (B, Cin, H, W), dtype=jnp.float32)

    # Deterministic init mimicking PyTorch Conv2d default (uniform in +-1/sqrt(fan_in))
    fan_in = Cin * 3 * 3
    bound = 1.0 / (fan_in ** 0.5)
    weight = jax.random.uniform(k_w, (Cout, Cin, 3, 3), minval=-bound, maxval=bound,
                                dtype=jnp.float32)
    bias = jax.random.uniform(k_b, (Cout,), minval=-bound, maxval=bound, dtype=jnp.float32)

    fwd = jax.jit(conv_block_forward)
    y = fwd(x, weight, bias)
    y = jax.block_until_ready(y)

    # Reference check against XLA conv (NCHW / OIHW), stride 2, pad 1, then LeakyReLU.
    ref = lax.conv_general_dilated(
        x, weight, window_strides=(2, 2), padding=((1, 1), (1, 1)),
        dimension_numbers=("NCHW", "OIHW", "NCHW"),
    ) + bias.reshape(1, Cout, 1, 1)
    ref = jnp.where(ref >= 0, ref, 0.01 * ref)

    assert y.shape == (B, Cout, H // 2, W // 2), y.shape
    # bf16 operands with f32 accumulation -> looser tolerance than pure f32.
    assert jnp.allclose(y, ref, atol=3e-2, rtol=3e-2), float(jnp.max(jnp.abs(y - ref)))

    print("KERNEL_OK")
</pallas_src>

<mosaic_0001>
module attributes {stable_mosaic.version = 11 : i64} {
  func.func @_convblock_kernel(%arg0: i32, %arg1: i32, %arg2: memref<128x128xbf16, #tpu.memory_space<vmem>>, %arg3: memref<128x128xbf16, #tpu.memory_space<vmem>>, %arg4: memref<1x128xf32, #tpu.memory_space<vmem>>, %arg5: memref<128x128xf32, #tpu.memory_space<vmem>>) attributes {dimension_semantics = [#tpu.dimension_semantics<parallel>, #tpu.dimension_semantics<parallel>], iteration_bounds = array<i64: 1, 1>, scalar_prefetch = 0 : i64, scratch_operands = 0 : i64, tpu.core_type = #tpu.core_type<tc>, window_params = [{transform_indices = @transform_0, window_bounds = array<i64: 128, 128>}, {transform_indices = @transform_1, window_bounds = array<i64: 128, 128>}, {transform_indices = @transform_2, window_bounds = array<i64: 1, 128>}, {transform_indices = @transform_3, window_bounds = array<i64: 128, 128>}]} {
    %c0 = arith.constant 0 : index
    %c0_0 = arith.constant 0 : index
    %0 = vector.load %arg2[%c0, %c0_0] : memref<128x128xbf16, #tpu.memory_space<vmem>>, vector<128x128xbf16>
    %c0_1 = arith.constant 0 : index
    %c0_2 = arith.constant 0 : index
    %1 = vector.load %arg3[%c0_1, %c0_2] : memref<128x128xbf16, #tpu.memory_space<vmem>>, vector<128x128xbf16>
    %cst = arith.constant dense<0.000000e+00> : vector<128x128xf32>
    %2 = tpu.matmul %0, %1, %cst {dimension_numbers = #tpu.dot_dimension_numbers<[1], [0], [0], [1], [0, 0, 1, 1], [], []>} : vector<128x128xbf16>, vector<128x128xbf16>, vector<128x128xf32> -> vector<128x128xf32>
    %c0_3 = arith.constant 0 : index
    %c0_4 = arith.constant 0 : index
    %3 = vector.load %arg4[%c0_3, %c0_4] : memref<1x128xf32, #tpu.memory_space<vmem>>, vector<1x128xf32>
    %4 = vector.broadcast %3 : vector<1x128xf32> to vector<128x128xf32>
    %5 = arith.addf %2, %4 : vector<128x128xf32>
    %cst_5 = arith.constant 0.000000e+00 : f32
    %6 = vector.broadcast %cst_5 : f32 to vector<128x128xf32>
    %7 = arith.cmpf oge, %5, %6 : vector<128x128xf32>
    %cst_6 = arith.constant 0.00999999977 : f32
    %8 = vector.broadcast %cst_6 : f32 to vector<128x128xf32>
    %9 = arith.mulf %8, %5 : vector<128x128xf32>
    %10 = arith.select %7, %5, %9 : vector<128x128xi1>, vector<128x128xf32>
    %c0_7 = arith.constant 0 : index
    %c0_8 = arith.constant 0 : index
    %11 = vector.load %arg5[%c0_7, %c0_8] : memref<128x128xf32, #tpu.memory_space<vmem>>, vector<128x128xf32>
    tpu.vector_store %arg5[%c0_7, %c0_8], %10 {strides = array<i32>} : memref<128x128xf32, #tpu.memory_space<vmem>>, vector<128x128xf32>,
    return
  }
  func.func @transform_0(%arg0: i32, %arg1: i32) -> (i32, i32) {
    %c0_i32 = arith.constant 0 : i32
    %c0_i32_0 = arith.constant 0 : i32
    return %arg0, %c0_i32 : i32, i32
  }
  func.func @transform_1(%arg0: i32, %arg1: i32) -> (i32, i32) {
    %c0_i32 = arith.constant 0 : i32
    %c0_i32_0 = arith.constant 0 : i32
    return %c0_i32, %arg1 : i32, i32
  }
  func.func @transform_2(%arg0: i32, %arg1: i32) -> (i32, i32) {
    %c0_i32 = arith.constant 0 : i32
    %c0_i32_0 = arith.constant 0 : i32
    return %c0_i32, %arg1 : i32, i32
  }
  func.func @transform_3(%arg0: i32, %arg1: i32) -> (i32, i32) {
    %c0_i32 = arith.constant 0 : i32
    return %arg0, %arg1 : i32, i32
  }
}

</mosaic_0001>

<llo_original>
// kernel: conv_block_forward.1
$region0: #{conv_block_forward.1}
  #allocation0 [shape = 'u32[]', space=smem, size = 0x4, offset = 0x4, fixed_abs, tag = 'smem constant byte address 0x4 - core index']
  #allocation1 [shape = 'u32[72,128]{1,0:T(1,128)}', space=vmem, size = 0x9000, scoped, tag = 'internal scratch']
  %s0 = inlined_call_operand.vmem [shape: bf16[128,128], index: 0, kind: input, shape index: {}]
  %s1 = inlined_call_operand.vmem [shape: bf16[128,128], index: 1, kind: input, shape index: {}]
  %s2 = inlined_call_operand.vmem [shape: f32[1,128], index: 2, kind: input, shape index: {}]
  %s3 = inlined_call_operand.vmem [shape: f32[128,128], index: 3, kind: output, shape index: {}]
  %s4 = sld [smem:[#allocation0]]
  $region22: #{conv_block_forward.1} parent=0
    _
  %s6 = ssub.s32 1, %s4
  %s7 = scalar_select 0, %s6, %s4
  // Predicated region
  $region2: #{conv_block_forward.1} parent=0 // pred_check
    _
  $region3: #{conv_block_forward.1} parent=0 // pred_check_branch
    %9 = sbr.rel (0) target = $region5
  $region4: #{conv_block_forward.1} parent=0 // pred_region
    _
  $region5: #{conv_block_forward.1} parent=0 // pred_fallthru
    _
  // Predicated region
  $region6: #{conv_block_forward.1} parent=0 // pred_check
    _
  $region7: #{conv_block_forward.1} parent=0 // pred_check_branch
    %11 = sbr.rel (0) target = $region9
  $region8: #{conv_block_forward.1} parent=0 // pred_region
    _
  $region9: #{conv_block_forward.1} parent=0 // pred_fallthru
    _
  // Predicated region
  $region10: #{conv_block_forward.1} parent=0 // pred_check
    _
  $region11: #{conv_block_forward.1} parent=0 // pred_check_branch
    %13 = sbr.rel (0) target = $region13
  $region12: #{conv_block_forward.1} parent=0 // pred_region
    _
  $region13: #{conv_block_forward.1} parent=0 // pred_fallthru
    _
  %v14 = vld [vmem:[%s0] sm:$0xf]
  %v15 = vld [vmem:[%s0 + $0x4] sm:$0xf]
  %v16 = vld [vmem:[%s0 + $0x8] sm:$0xf]
  %v17 = vld [vmem:[%s0 + $0xc] sm:$0xf]
  %v18 = vld [vmem:[%s0 + $0x10] sm:$0xf]
  %v19 = vld [vmem:[%s0 + $0x14] sm:$0xf]
  %v20 = vld [vmem:[%s0 + $0x18] sm:$0xf]
  %v21 = vld [vmem:[%s0 + $0x1c] sm:$0xf]
  %v22 = vld [vmem:[%s0 + $0x20] sm:$0xf]
  %v23 = vld [vmem:[%s0 + $0x24] sm:$0xf]
  %v24 = vld [vmem:[%s0 + $0x28] sm:$0xf]
  %v25 = vld [vmem:[%s0 + $0x2c] sm:$0xf]
  %v26 = vld [vmem:[%s0 + $0x30] sm:$0xf]
  %v27 = vld [vmem:[%s0 + $0x34] sm:$0xf]
  %v28 = vld [vmem:[%s0 + $0x38] sm:$0xf]
  %v29 = vld [vmem:[%s0 + $0x3c] sm:$0xf]
  %v30 = vld [vmem:[%s1] sm:$0xf]
  %v31 = vld [vmem:[%s1 + $0x4] sm:$0xf]
  %v32 = vld [vmem:[%s1 + $0x8] sm:$0xf]
  %v33 = vld [vmem:[%s1 + $0xc] sm:$0xf]
  %v34 = vld [vmem:[%s1 + $0x10] sm:$0xf]
  %v35 = vld [vmem:[%s1 + $0x14] sm:$0xf]
  %v36 = vld [vmem:[%s1 + $0x18] sm:$0xf]
  %v37 = vld [vmem:[%s1 + $0x1c] sm:$0xf]
  %v38 = vld [vmem:[%s1 + $0x20] sm:$0xf]
  %v39 = vld [vmem:[%s1 + $0x24] sm:$0xf]
  %v40 = vld [vmem:[%s1 + $0x28] sm:$0xf]
  %v41 = vld [vmem:[%s1 + $0x2c] sm:$0xf]
  %v42 = vld [vmem:[%s1 + $0x30] sm:$0xf]
  %v43 = vld [vmem:[%s1 + $0x34] sm:$0xf]
  %v44 = vld [vmem:[%s1 + $0x38] sm:$0xf]
  %v45 = vld [vmem:[%s1 + $0x3c] sm:$0xf]
  %v46 = vld [vmem:[%s2] sm:$0x1]
  %v48 = vperm.slane %v46, 0
  %v66 = vunpack.c.l.b16 %v14
  %v67 = vunpack.c.l.b16 %v15
  %v68 = vunpack.c.l.b16 %v16
  %v69 = vunpack.c.l.b16 %v17
  %v70 = vunpack.c.l.b16 %v18
  %v71 = vunpack.c.l.b16 %v19
  %v72 = vunpack.c.l.b16 %v20
  %v73 = vunpack.c.l.b16 %v21
  %v74 = vunpack.c.l.b16 %v22
  %v75 = vunpack.c.l.b16 %v23
  %v76 = vunpack.c.l.b16 %v24
  %v77 = vunpack.c.l.b16 %v25
  %v78 = vunpack.c.l.b16 %v26
  %v79 = vunpack.c.l.b16 %v27
  %v80 = vunpack.c.l.b16 %v28
  %v81 = vunpack.c.l.b16 %v29
  %v82 = vpack.c.b16 %v67, %v66
  %v83 = vpack.c.b16 %v69, %v68
  %v84 = vpack.c.b16 %v71, %v70
  %v85 = vpack.c.b16 %v73, %v72
  %v86 = vpack.c.b16 %v75, %v74
  %v87 = vpack.c.b16 %v77, %v76
  %v88 = vpack.c.b16 %v79, %v78
  %v89 = vpack.c.b16 %v81, %v80
  %v114 = vunpack.c.l.b16 %v30
  %v115 = vunpack.c.l.b16 %v31
  %v116 = vunpack.c.l.b16 %v32
  %v117 = vunpack.c.l.b16 %v33
  %v118 = vunpack.c.l.b16 %v34
  %v119 = vunpack.c.l.b16 %v35
  %v120 = vunpack.c.l.b16 %v36
  %v121 = vunpack.c.l.b16 %v37
  %v122 = vunpack.c.l.b16 %v38
  %v123 = vunpack.c.l.b16 %v39
  %v124 = vunpack.c.l.b16 %v40
  %v125 = vunpack.c.l.b16 %v41
  %v126 = vunpack.c.l.b16 %v42
  %v127 = vunpack.c.l.b16 %v43
  %v128 = vunpack.c.l.b16 %v44
  %v129 = vunpack.c.l.b16 %v45
  %v130 = vpack.c.b16 %v115, %v114
  %v131 = vpack.c.b16 %v117, %v116
  %v132 = vpack.c.b16 %v119, %v118
  %v133 = vpack.c.b16 %v121, %v120
  %v134 = vpack.c.b16 %v123, %v122
  %v135 = vpack.c.b16 %v125, %v124
  %v136 = vpack.c.b16 %v127, %v126
  %v137 = vpack.c.b16 %v129, %v128
  %146 = vmatpush.bf16.msra.mxu0 %v137
  %147 = vmatpush.bf16.msra.mxu0 %v136
  %148 = vmatpush.bf16.msra.mxu0 %v135
  %149 = vmatpush.bf16.msra.mxu0 %v134
  %150 = vmatpush.bf16.msra.mxu0 %v133
  %151 = vmatpush.bf16.msra.mxu0 %v132
  %152 = vmatpush.bf16.msra.mxu0 %v131
  %153 = vmatpush.bf16.msra.mxu0 %v130
  %154 = vmatmul.bf16.gmra.mxu0 %v82
  %v155 = vpop.f32.mrf.mxu0
  %v156 = vadd.f32 %v48, %v155
  %v157 = vpop.f32.mrf.mxu0
  %v158 = vadd.f32 %v48, %v157
  %159 = vmatmul.bf16.gmra.mxu0 %v83
  %v160 = vpop.f32.mrf.mxu0
  %v161 = vadd.f32 %v48, %v160
  %v162 = vpop.f32.mrf.mxu0
  %v163 = vadd.f32 %v48, %v162
  %164 = vmatmul.bf16.gmra.mxu0 %v84
  %v165 = vpop.f32.mrf.mxu0
  %v166 = vadd.f32 %v48, %v165
  %v167 = vpop.f32.mrf.mxu0
  %v168 = vadd.f32 %v48, %v167
  %169 = vmatmul.bf16.gmra.mxu0 %v85
  %v170 = vpop.f32.mrf.mxu0
  %v171 = vadd.f32 %v48, %v170
  %v172 = vpop.f32.mrf.mxu0
  %v173 = vadd.f32 %v48, %v172
  %174 = vmatmul.bf16.gmra.mxu0 %v86
  %v175 = vpop.f32.mrf.mxu0
  %v176 = vadd.f32 %v48, %v175
  %v177 = vpop.f32.mrf.mxu0
  %v178 = vadd.f32 %v48, %v177
  %179 = vmatmul.bf16.gmra.mxu0 %v87
  %v180 = vpop.f32.mrf.mxu0
  %v181 = vadd.f32 %v48, %v180
  %v182 = vpop.f32.mrf.mxu0
  %v183 = vadd.f32 %v48, %v182
  %184 = vmatmul.bf16.gmra.mxu0 %v88
  %v185 = vpop.f32.mrf.mxu0
  %v186 = vadd.f32 %v48, %v185
  %v187 = vpop.f32.mrf.mxu0
  %v188 = vadd.f32 %v48, %v187
  %189 = vmatmul.bf16.gmra.mxu0 %v89
  %v190 = vpop.f32.mrf.mxu0
  %v191 = vadd.f32 %v48, %v190
  %v192 = vpop.f32.mrf.mxu0
  %v193 = vadd.f32 %v48, %v192
  %194 = vdwg.mxu0
  %vm195 = vcmp.ge.f32.partialorder %v156, 0.0
  %vm196 = vcmp.ge.f32.partialorder %v158, 0.0
  %vm197 = vcmp.ge.f32.partialorder %v161, 0.0
  %vm198 = vcmp.ge.f32.partialorder %v163, 0.0
  %vm199 = vcmp.ge.f32.partialorder %v166, 0.0
  %vm200 = vcmp.ge.f32.partialorder %v168, 0.0
  %vm201 = vcmp.ge.f32.partialorder %v171, 0.0
  %vm202 = vcmp.ge.f32.partialorder %v173, 0.0
  %vm203 = vcmp.ge.f32.partialorder %v176, 0.0
  %vm204 = vcmp.ge.f32.partialorder %v178, 0.0
  %vm205 = vcmp.ge.f32.partialorder %v181, 0.0
  %vm206 = vcmp.ge.f32.partialorder %v183, 0.0
  %vm207 = vcmp.ge.f32.partialorder %v186, 0.0
  %vm208 = vcmp.ge.f32.partialorder %v188, 0.0
  %vm209 = vcmp.ge.f32.partialorder %v191, 0.0
  %vm210 = vcmp.ge.f32.partialorder %v193, 0.0
  %v211 = vmul.f32 %v156, 0.01
  %v212 = vmul.f32 %v158, 0.01
  %v213 = vmul.f32 %v161, 0.01
  %v214 = vmul.f32 %v163, 0.01
  %v215 = vmul.f32 %v166, 0.01
  %v216 = vmul.f32 %v168, 0.01
  %v217 = vmul.f32 %v171, 0.01
  %v218 = vmul.f32 %v173, 0.01
  %v219 = vmul.f32 %v176, 0.01
  %v220 = vmul.f32 %v178, 0.01
  %v221 = vmul.f32 %v181, 0.01
  %v222 = vmul.f32 %v183, 0.01
  %v223 = vmul.f32 %v186, 0.01
  %v224 = vmul.f32 %v188, 0.01
  %v225 = vmul.f32 %v191, 0.01
  %v226 = vmul.f32 %v193, 0.01
  %v227 = vsel %vm195, %v156, %v211
  %v228 = vsel %vm196, %v158, %v212
  %v229 = vsel %vm197, %v161, %v213
  %v230 = vsel %vm198, %v163, %v214
  %v231 = vsel %vm199, %v166, %v215
  %v232 = vsel %vm200, %v168, %v216
  %v233 = vsel %vm201, %v171, %v217
  %v234 = vsel %vm202, %v173, %v218
  %v235 = vsel %vm203, %v176, %v219
  %v236 = vsel %vm204, %v178, %v220
  %v237 = vsel %vm205, %v181, %v221
  %v238 = vsel %vm206, %v183, %v222
  %v239 = vsel %vm207, %v186, %v223
  %v240 = vsel %vm208, %v188, %v224
  %v241 = vsel %vm209, %v191, %v225
  %v242 = vsel %vm210, %v193, %v226
  %243 = vst [vmem:[%s3] sm:$0xff] %v227
  %244 = vst [vmem:[%s3 + $0x8] sm:$0xff] %v228
  %245 = vst [vmem:[%s3 + $0x10] sm:$0xff] %v229
  %246 = vst [vmem:[%s3 + $0x18] sm:$0xff] %v230
  %247 = vst [vmem:[%s3 + $0x20] sm:$0xff] %v231
  %248 = vst [vmem:[%s3 + $0x28] sm:$0xff] %v232
  %249 = vst [vmem:[%s3 + $0x30] sm:$0xff] %v233
  %250 = vst [vmem:[%s3 + $0x38] sm:$0xff] %v234
  %251 = vst [vmem:[%s3 + $0x40] sm:$0xff] %v235
  %252 = vst [vmem:[%s3 + $0x48] sm:$0xff] %v236
  %253 = vst [vmem:[%s3 + $0x50] sm:$0xff] %v237
  %254 = vst [vmem:[%s3 + $0x58] sm:$0xff] %v238
  %255 = vst [vmem:[%s3 + $0x60] sm:$0xff] %v239
  %256 = vst [vmem:[%s3 + $0x68] sm:$0xff] %v240
  %257 = vst [vmem:[%s3 + $0x70] sm:$0xff] %v241
  %258 = vst [vmem:[%s3 + $0x78] sm:$0xff] %v242
  // Predicated region
  $region14: #{conv_block_forward.1} parent=0 // pred_check
    _
  $region15: #{conv_block_forward.1} parent=0 // pred_check_branch
    %260 = sbr.rel (0) target = $region17
  $region16: #{conv_block_forward.1} parent=0 // pred_region
    _
  $region17: #{conv_block_forward.1} parent=0 // pred_fallthru
    _
  // Predicated region
  $region18: #{conv_block_forward.1} parent=0 // pred_check
    _
  $region19: #{conv_block_forward.1} parent=0 // pred_check_branch
    %262 = sbr.rel (0) target = $region21
  $region20: #{conv_block_forward.1} parent=0 // pred_region
    _
  $region21: #{conv_block_forward.1} parent=0 // pred_fallthru
    _

</llo_original>
